<compile_context>
chip_gen: v7x
topology: tpu7x:2x2x1
jax: 0.10.0
libtpu: 0.0.40
codegen_flags: <defaults>
</compile_context>

<pallas_src>
import math

import numpy as np
import jax
import jax.numpy as jnp
from jax.experimental import pallas as pl
from jax.experimental.pallas import tpu as pltpu


def _scale_kernel(x_ref, mean_ref, inv_std_ref, o_ref):
    # x_ref:       (TR, TL)  data tile
    # mean_ref:    (TR, 1)   per-row mean (f32, resident across lane steps)
    # inv_std_ref: (TR, 1)   per-row 1/std (f32, resident across lane steps)
    x = x_ref[...].astype(jnp.float32)
    o_ref[...] = ((x - mean_ref[...]) * inv_std_ref[...]).astype(o_ref.dtype)


def _round_up(x, m):
    return -(-x // m) * m


def _choose_tiles(R, S, itemsize, *, vmem_block_budget=16 << 20,
                  min_grid_steps=8, min_lane_tile=512):
    """Pick (row_tile, lane_tile).

    Budget model: ~4 live data blocks (double-buffered input + output) of
    row_tile*lane_tile*itemsize bytes must fit `vmem_block_budget` (the f32
    upcast temp rides in the vmem_limit headroom).  Prefer lane tiles >= 512
    (lane-dense vst, big DMA bursts); for large R tile the rows instead of
    shrinking lanes.  Prefer >= min_grid_steps total steps so v7x megacore
    gets several pipelined steps per core.  Ragged edges are handled by the
    cdiv grid + masking, so nothing here has to divide R or S exactly.
    """
    lane_cap = _round_up(max(S, 1), 128)
    min_lane = min(min_lane_tile, lane_cap)

    # Row tile: full R if a min_lane-wide block fits the budget; else the
    # largest multiple of 8 that does.
    if R <= 8 or 4 * R * min_lane * itemsize <= vmem_block_budget:
        row_tile = R
    else:
        row_tile = max(8, (vmem_block_budget // (4 * min_lane * itemsize)) // 8 * 8)
        row_tile = min(row_tile, R)

    # Lane tile from the remaining budget (128-aligned).
    max_lane = max(128, (vmem_block_budget // (4 * row_tile * itemsize)) // 128 * 128)
    lane_tile = min(max_lane, lane_cap)

    # Prefer >= min_grid_steps total grid steps, but never drop below min_lane.
    row_steps = pl.cdiv(R, row_tile)
    if row_steps * pl.cdiv(S, lane_tile) < min_grid_steps and lane_tile > min_lane:
        want = _round_up(pl.cdiv(S, max(1, min_grid_steps // row_steps)), 128)
        lane_tile = max(min_lane, min(lane_tile, want))

    return row_tile, lane_tile


def feature_scaler_forward(data, mean, var, *, tile=None, row_tile=None,
                           vmem_block_budget=16 << 20, min_grid_steps=8,
                           donate_input=False):
    """Normalize `data` (b, c, nx, ny, nz, T) with per-channel mean/var.

    Matches FeatureScaler.forward: out = (data - mean) / sqrt(var), broadcast
    over all non-channel dims.  Stats math is done in f32; output keeps
    data.dtype.
    """
    orig_shape = data.shape
    b, c = data.shape[:2]
    S = int(np.prod(data.shape[2:])) if data.ndim > 2 else 1
    R = b * c
    itemsize = jnp.dtype(data.dtype).itemsize

    # Per-row stats in f32; flattened row r of (R, S) is channel r % c.
    mean32 = jnp.asarray(mean, jnp.float32).reshape(c)
    inv_std32 = 1.0 / jnp.sqrt(jnp.asarray(var, jnp.float32).reshape(c))
    mean_rows = jnp.tile(mean32, b)       # (R,)
    inv_rows = jnp.tile(inv_std32, b)     # (R,)

    # Small/odd-R fold: make the sublane axis a multiple of 8 by folding a
    # spatial factor G (G | S) into the rows, so vregs and VMEM tiles fill.
    G = 1
    if R % 8 != 0:
        g_need = 8 // math.gcd(R, 8)
        for cand in range(g_need, 65, g_need):
            if S % cand == 0:
                G = cand
                break
    if G > 1:
        R_k, S_k = R * G, S // G
        mean_rows = jnp.repeat(mean_rows, G)
        inv_rows = jnp.repeat(inv_rows, G)
    else:
        R_k, S_k = R, S

    x = data.reshape(R_k, S_k)
    mean_rows = mean_rows.reshape(R_k, 1)
    inv_rows = inv_rows.reshape(R_k, 1)

    if tile is None or row_tile is None:
        tr, tl = _choose_tiles(R_k, S_k, itemsize,
                               vmem_block_budget=vmem_block_budget,
                               min_grid_steps=min_grid_steps)
        if row_tile is None:
            row_tile = tr
        if tile is None:
            tile = tl
    # Full-extent fallbacks (allowed regardless of (8,128) alignment).
    if tile >= S_k:
        tile = S_k
    if row_tile >= R_k:
        row_tile = R_k

    grid = (pl.cdiv(R_k, row_tile), pl.cdiv(S_k, tile))

    cost = pl.CostEstimate(
        flops=2 * R_k * S_k,
        transcendentals=0,
        bytes_accessed=2 * R_k * S_k * itemsize + 2 * R_k * 4,
    )

    extra_kwargs = {}
    if donate_input:
        # Alias the (reshaped) input to the output; takes effect when the
        # caller donates the buffer at the jit boundary.
        extra_kwargs["input_output_aliases"] = {0: 0}

    out = pl.pallas_call(
        _scale_kernel,
        out_shape=jax.ShapeDtypeStruct((R_k, S_k), data.dtype),
        grid_spec=pltpu.PrefetchScalarGridSpec(
            num_scalar_prefetch=0,
            grid=grid,
            in_specs=[
                pl.BlockSpec((row_tile, tile), lambda r, k: (r, k)),
                pl.BlockSpec((row_tile, 1), lambda r, k: (r, 0)),   # mean (resident)
                pl.BlockSpec((row_tile, 1), lambda r, k: (r, 0)),   # 1/std (resident)
            ],
            out_specs=pl.BlockSpec((row_tile, tile), lambda r, k: (r, k)),
        ),
        compiler_params=pltpu.CompilerParams(
            dimension_semantics=("parallel", "parallel"),
            vmem_limit_bytes=48 << 20,   # safe on v5e/v6e (128 MiB) and v7x (64 MiB)
        ),
        cost_estimate=cost,
        **extra_kwargs,
    )(x, mean_rows, inv_rows)

    return out.reshape(orig_shape)


def feature_scaler_fit(data):
    """Mirror of FeatureScaler.fit (plain-JAX glue; the c-length reductions
    are not the forward hot path, so no kernel needed).

    Returns (mean, var, N) with var the unbiased variance (torch.var default).
    """
    b, c = data.shape[:2]
    features = data.reshape(b, c, -1)
    mean = features.mean(axis=(0, 2))
    var = features.var(axis=(0, 2), ddof=1)
    N = b * int(np.prod(data.shape[2:]))
    return mean, var, N


if __name__ == "__main__":
    key = jax.random.PRNGKey(0)
    k1, k2, k3 = jax.random.split(key, 3)

    def ref_forward(x, mean, var):
        std = jnp.sqrt(var)
        bshape = (1, -1) + (1,) * (x.ndim - 2)
        return (x - mean.reshape(bshape)) / std.reshape(bshape)

    # Case 1: friendly shape (R = b*c = 8 rows, S = 512 lanes), stats from fit.
    b, c, nx, ny, nz, T = 2, 4, 4, 4, 4, 8
    scale = jnp.arange(1, c + 1, dtype=jnp.float32).reshape(1, c, 1, 1, 1, 1)
    shift = jnp.arange(c, dtype=jnp.float32).reshape(1, c, 1, 1, 1, 1)
    fit_data = jax.random.normal(k1, (b, c, nx, ny, nz, T), dtype=jnp.float32) * scale + shift
    mean, var, _N = feature_scaler_fit(fit_data)

    x = jax.random.normal(k2, (b, c, nx, ny, nz, T), dtype=jnp.float32)
    out = jax.block_until_ready(feature_scaler_forward(x, mean, var))
    np.testing.assert_allclose(np.asarray(out),
                               np.asarray(ref_forward(x, mean, var)),
                               rtol=1e-5, atol=1e-5)

    # Case 2: odd R (b*c = 6 -> folded by G=4 to 24 sublanes) and an explicit
    # 128-lane tile over S_k = 180 to exercise the masked ragged-edge path.
    b2, c2, nx2, ny2, nz2, T2 = 2, 3, 4, 4, 5, 9
    mean2 = jnp.arange(1.0, c2 + 1.0, dtype=jnp.float32)
    var2 = jnp.arange(1.0, c2 + 1.0, dtype=jnp.float32) * 0.5
    x2 = jax.random.normal(k3, (b2, c2, nx2, ny2, nz2, T2), dtype=jnp.float32) * 2.0 + 1.0
    out2 = jax.block_until_ready(
        feature_scaler_forward(x2, mean2, var2, tile=128, row_tile=8))
    np.testing.assert_allclose(np.asarray(out2),
                               np.asarray(ref_forward(x2, mean2, var2)),
                               rtol=1e-5, atol=1e-5)

    print("KERNEL_OK")
</pallas_src>

<mosaic_0001>
module attributes {stable_mosaic.version = 11 : i64} {
  func.func @_scale_kernel(%arg0: i32, %arg1: i32, %arg2: memref<8x512xf32, #tpu.memory_space<vmem>>, %arg3: memref<8x1xf32, #tpu.memory_space<vmem>>, %arg4: memref<8x1xf32, #tpu.memory_space<vmem>>, %arg5: memref<8x512xf32, #tpu.memory_space<vmem>>) attributes {dimension_semantics = [#tpu.dimension_semantics<parallel>, #tpu.dimension_semantics<parallel>], iteration_bounds = array<i64: 1, 1>, scalar_prefetch = 0 : i64, scratch_operands = 0 : i64, tpu.core_type = #tpu.core_type<tc>, window_params = [{transform_indices = @transform_0, window_bounds = array<i64: 8, 512>}, {transform_indices = @transform_1, window_bounds = array<i64: 8, 1>}, {transform_indices = @transform_2, window_bounds = array<i64: 8, 1>}, {transform_indices = @transform_3, window_bounds = array<i64: 8, 512>}]} {
    %c0 = arith.constant 0 : index
    %c0_0 = arith.constant 0 : index
    %0 = vector.load %arg2[%c0, %c0_0] : memref<8x512xf32, #tpu.memory_space<vmem>>, vector<8x512xf32>
    %c0_1 = arith.constant 0 : index
    %c0_2 = arith.constant 0 : index
    %1 = vector.load %arg3[%c0_1, %c0_2] : memref<8x1xf32, #tpu.memory_space<vmem>>, vector<8x1xf32>
    %2 = vector.broadcast %1 : vector<8x1xf32> to vector<8x512xf32>
    %3 = arith.subf %0, %2 : vector<8x512xf32>
    %c0_3 = arith.constant 0 : index
    %c0_4 = arith.constant 0 : index
    %4 = vector.load %arg4[%c0_3, %c0_4] : memref<8x1xf32, #tpu.memory_space<vmem>>, vector<8x1xf32>
    %5 = vector.broadcast %4 : vector<8x1xf32> to vector<8x512xf32>
    %6 = arith.mulf %3, %5 : vector<8x512xf32>
    %c0_5 = arith.constant 0 : index
    %c0_6 = arith.constant 0 : index
    %7 = vector.load %arg5[%c0_5, %c0_6] : memref<8x512xf32, #tpu.memory_space<vmem>>, vector<8x512xf32>
    tpu.vector_store %arg5[%c0_5, %c0_6], %6 {strides = array<i32>} : memref<8x512xf32, #tpu.memory_space<vmem>>, vector<8x512xf32>,
    return
  }
  func.func @transform_0(%arg0: i32, %arg1: i32) -> (i32, i32) {
    %c0_i32 = arith.constant 0 : i32
    return %arg0, %arg1 : i32, i32
  }
  func.func @transform_1(%arg0: i32, %arg1: i32) -> (i32, i32) {
    %c0_i32 = arith.constant 0 : i32
    %c0_i32_0 = arith.constant 0 : i32
    return %arg0, %c0_i32 : i32, i32
  }
  func.func @transform_2(%arg0: i32, %arg1: i32) -> (i32, i32) {
    %c0_i32 = arith.constant 0 : i32
    %c0_i32_0 = arith.constant 0 : i32
    return %arg0, %c0_i32 : i32, i32
  }
  func.func @transform_3(%arg0: i32, %arg1: i32) -> (i32, i32) {
    %c0_i32 = arith.constant 0 : i32
    return %arg0, %arg1 : i32, i32
  }
}

</mosaic_0001>

<llo_original>
// kernel: tpu_custom_call.1
$region0: #{tpu_custom_call.1}
  #allocation0 [shape = 'u32[]', space=smem, size = 0x4, offset = 0x4, fixed_abs, tag = 'smem constant byte address 0x4 - core index']
  #allocation1 [shape = 'u32[144,128]{1,0:T(1,128)}', space=vmem, size = 0x12000, scoped, tag = 'internal scratch']
  %s0 = inlined_call_operand.hbm [shape: f32[8,512], index: 0, kind: input, shape index: {}]
  %s1 = inlined_call_operand.vmem [shape: f32[8,1], index: 1, kind: input, shape index: {}]
  %s2 = inlined_call_operand.vmem [shape: f32[8,1], index: 2, kind: input, shape index: {}]
  %s3 = inlined_call_operand.hbm [shape: f32[8,512], index: 3, kind: output, shape index: {}]
  %s4 = sld [smem:[#allocation0]]
  $region26: #{tpu_custom_call.1} parent=0
    _
  %s6 = ssub.s32 1, %s4
  %s7 = scalar_select 0, %s6, %s4
  $region1: #{tpu_custom_call.1} parent=0
    #allocation2 [shape = 'u8[16384]{0}', space=vmem, size = 0x4000, scoped, tag = 'input window, operand 0, single buffered']
    #allocation3 [shape = 's32[1]{0}', space=sflag, size = 0x4, scoped, tag = 'scoped memory for tpu_custom_call.1']
    #allocation4 [shape = 's32[1]{0}', space=sflag, size = 0x4, scoped, tag = 'scoped memory for tpu_custom_call.1']
    #allocation5 [shape = 'u8[16384]{0}', space=vmem, size = 0x4000, scoped, tag = 'output window, operand 0, single buffered']
    %8 = vsyncpa [#allocation3], 0
    %9 = vsyncpa [#allocation4], 0
    // Predicated region
    $region2: #{tpu_custom_call.1} parent=1 // pred_check
      _
    $region3: #{tpu_custom_call.1} parent=1 // pred_check_branch
      %11 = sbr.rel (0) target = $region5
    $region4: #{tpu_custom_call.1} parent=1 // pred_region
      %s13 = ssub.s32 512, 512
      %14 = vsyncadd [#allocation3], %s13
      %s16 = sshll.u32 [#allocation2], 4
      %s17 = int_to_ptr.vmem [resolvable:$true] %s16
      %19 = dma.hbm_to_vmem [thread:$0]  %s0, 512, %s17, [#allocation3]
    $region5: #{tpu_custom_call.1} parent=1 // pred_fallthru
      _
    // Predicated region
    $region6: #{tpu_custom_call.1} parent=1 // pred_check
      _
    $region7: #{tpu_custom_call.1} parent=1 // pred_check_branch
      %21 = sbr.rel (0) target = $region9
    $region8: #{tpu_custom_call.1} parent=1 // pred_region
      _
    $region9: #{tpu_custom_call.1} parent=1 // pred_fallthru
      _
    // Predicated region
    $region10: #{tpu_custom_call.1} parent=1 // pred_check
      _
    $region11: #{tpu_custom_call.1} parent=1 // pred_check_branch
      %23 = sbr.rel (0) target = $region13
    $region12: #{tpu_custom_call.1} parent=1 // pred_region
      _
    $region13: #{tpu_custom_call.1} parent=1 // pred_fallthru
      _
    // Predicated region
    $region14: #{tpu_custom_call.1} parent=1 // pred_check
      _
    $region15: #{tpu_custom_call.1} parent=1 // pred_check_branch
      %25 = sbr.rel (0) target = $region17
    $region16: #{tpu_custom_call.1} parent=1 // pred_region
      %26 = dma.done [#allocation3], 512
    $region17: #{tpu_custom_call.1} parent=1 // pred_fallthru
      _
    %v27 = vld [vmem:[#allocation2] sm:$0xff]
    %v28 = vld [vmem:[#allocation2 + $0x8] sm:$0xff]
    %v29 = vld [vmem:[#allocation2 + $0x10] sm:$0xff]
    %v30 = vld [vmem:[#allocation2 + $0x18] sm:$0xff]
    %v31 = vld [vmem:[%s1] sm:$0xff]
    %33 = vset.pattern.permute.xlu0 0
    %34 = vperm.xlu0 %33, %v31
    %v35 = vpop.permute.xlu0 %34
    %v37 = vsub.f32 %v27, %v35
    %v38 = vsub.f32 %v28, %v35
    %v39 = vsub.f32 %v29, %v35
    %v40 = vsub.f32 %v30, %v35
    %v41 = vld [vmem:[%s2] sm:$0xff]
    %43 = vset.pattern.permute.xlu0 0
    %44 = vperm.xlu0 %43, %v41
    %v45 = vpop.permute.xlu0 %44
    %v47 = vmul.f32 %v37, %v45
    %v48 = vmul.f32 %v38, %v45
    %v49 = vmul.f32 %v39, %v45
    %v50 = vmul.f32 %v40, %v45
    %51 = vst [vmem:[#allocation5] sm:$0xff] %v47
    %52 = vst [vmem:[#allocation5 + $0x8] sm:$0xff] %v48
    %53 = vst [vmem:[#allocation5 + $0x10] sm:$0xff] %v49
    %54 = vst [vmem:[#allocation5 + $0x18] sm:$0xff] %v50
    // Predicated region
    $region18: #{tpu_custom_call.1} parent=1 // pred_check
      _
    $region19: #{tpu_custom_call.1} parent=1 // pred_check_branch
      %56 = sbr.rel (0) target = $region21
    $region20: #{tpu_custom_call.1} parent=1 // pred_region
      %s58 = ssub.s32 512, 512
      %59 = vsyncadd [#allocation4], %s58
      %s61 = sshll.u32 [#allocation5], 4
      %s62 = int_to_ptr.vmem [resolvable:$true] %s61
      %64 = dma.vmem_to_hbm [thread:$0]  %s62, 512, %s3, [#allocation4]
    $region21: #{tpu_custom_call.1} parent=1 // pred_fallthru
      _
    // Predicated region
    $region22: #{tpu_custom_call.1} parent=1 // pred_check
      _
    $region23: #{tpu_custom_call.1} parent=1 // pred_check_branch
      %66 = sbr.rel (0) target = $region25
    $region24: #{tpu_custom_call.1} parent=1 // pred_region
      %67 = dma.done [#allocation4], 512
    $region25: #{tpu_custom_call.1} parent=1 // pred_fallthru
      _
    %68 = vsyncpa [#allocation3], 1
    %69 = vsyncpa [#allocation4], 1

</llo_original>
